<compile_context>
chip_gen: v6e
topology: v6e:2x2x1
jax: 0.10.0
libtpu: 0.0.40
codegen_flags: <defaults>
</compile_context>

<pallas_src>
import functools

import jax
import jax.numpy as jnp
from jax import lax
from jax.experimental import pallas as pl
from jax.experimental.pallas import tpu as pltpu

_LANE = 128
_SUBLANE = 8


def _ensemble_kernel(x_ref, w_ref, b_ref, sc_ref, out_ref, acc_ref, *, d, tk):
    """Grid = (batch_tiles, k_tiles).  Accumulate z = x @ W_diff over k into a
    per-batch-tile f32 scratch; on the last k step apply the exact 2-class
    softmax p1 = sigmoid(z + b_diff) and the weighted member reduction."""
    k = pl.program_id(1)

    @pl.when(k == 0)
    def _init():
        acc_ref[...] = jnp.zeros_like(acc_ref)

    x = x_ref[...]
    if d % tk != 0:
        # Last K block hangs past the end of x: zero the out-of-range columns
        # (W_diff rows there are zero-padded at pack time, so this is exact).
        col = k * tk + lax.broadcasted_iota(jnp.int32, x.shape, 1)
        x = jnp.where(col < d, x, jnp.zeros_like(x))

    acc_ref[...] += jnp.dot(x, w_ref[...], preferred_element_type=jnp.float32)

    @pl.when(k == pl.num_programs(1) - 1)
    def _finalize():
        z = acc_ref[...] + b_ref[...]
        p1 = jax.nn.sigmoid(z)                       # exact 2-class softmax
        # Padded member columns have scale 0 -> contribute exactly nothing.
        out_ref[...] = jnp.sum(p1 * sc_ref[...], axis=-1, keepdims=True)


def pack_ensemble(W_stack, b_stack, member_weights, *,
                  compute_dtype=jnp.float32, k_tile=1024):
    """One-time (init-time) packing of the ensemble into fused, lane-aligned
    slabs.  Call once; pass the result to every forward call."""
    W_stack = jnp.asarray(W_stack, jnp.float32)
    b_stack = jnp.asarray(b_stack, jnp.float32)
    M, D, NC = W_stack.shape
    assert NC == 2, "forward thresholds ans[:, 1] -> binary classifier"

    # self.weights = w * (M / sum(w)); in-kernel scale = self.weights / M
    #              = w / sum(w).  Scales of real members sum to exactly 1.
    w_raw = jnp.asarray(member_weights, jnp.float32)
    scale = w_raw / jnp.sum(w_raw)

    Mp = _LANE * pl.cdiv(M, _LANE)                   # members -> lane tile

    # K tile: lane-aligned k_tile for large D; if D fits one block, split it
    # in two so the k grid axis still pipelines x DMA against the MXU.
    if D > k_tile:
        tk = max(_LANE, _LANE * (k_tile // _LANE))
    elif D >= 2 * _LANE and D % _LANE == 0:
        tk = _LANE * pl.cdiv(D // 2, _LANE)
    else:
        tk = D
    Dp = tk * pl.cdiv(D, tk)

    # Class-difference slab: z = x @ W_diff + b_diff, p1 = sigmoid(z).
    W_diff = jnp.zeros((Dp, Mp), jnp.float32)
    W_diff = W_diff.at[:D, :M].set((W_stack[:, :, 1] - W_stack[:, :, 0]).T)
    b_diff = jnp.zeros((1, Mp), jnp.float32).at[0, :M].set(
        b_stack[:, 1] - b_stack[:, 0])
    scale_row = jnp.zeros((1, Mp), jnp.float32).at[0, :M].set(scale)

    return dict(W_diff=W_diff.astype(compute_dtype), b_diff=b_diff,
                scale_row=scale_row, D=D, Dp=Dp, Mp=Mp, tk=int(tk), M=M,
                compute_dtype=compute_dtype)


def ensemble_classifier_forward(x_nchw, packed, boundary=0.75, batch_tile=512):
    """x_nchw: [B, C, H, W]; packed: output of pack_ensemble().
       Returns (bool mask [B], ans [B, 2]) matching the PyTorch forward."""
    B = x_nchw.shape[0]
    D, Dp, Mp, tk = packed["D"], packed["Dp"], packed["Mp"], packed["tk"]
    cdt = packed["compute_dtype"]

    x_flat = x_nchw.reshape(B, -1)
    assert x_flat.shape[1] == D
    if x_flat.dtype != cdt:
        x_flat = x_flat.astype(cdt)   # no-op when callers already supply cdt

    # Batch tile: full B when it fits (no padding copy of x); otherwise a
    # sublane-aligned tile — the last partial block relies on edge-block
    # masking (row-independent math, out-of-range rows dropped on writeback).
    if B <= batch_tile:
        tb = B
    else:
        tb = max(_SUBLANE, _SUBLANE * (batch_tile // _SUBLANE))

    grid = (pl.cdiv(B, tb), Dp // tk)

    ans1 = pl.pallas_call(
        functools.partial(_ensemble_kernel, d=D, tk=tk),
        out_shape=jax.ShapeDtypeStruct((B, 1), jnp.float32),
        grid_spec=pltpu.PrefetchScalarGridSpec(
            num_scalar_prefetch=0,
            grid=grid,
            in_specs=[
                pl.BlockSpec((tb, tk), lambda i, k: (i, k)),    # x rows/K
                pl.BlockSpec((tk, Mp), lambda i, k: (k, 0)),    # W_diff K slab
                pl.BlockSpec((1, Mp), lambda i, k: (0, 0)),     # b_diff
                pl.BlockSpec((1, Mp), lambda i, k: (0, 0)),     # member scale
            ],
            out_specs=pl.BlockSpec((tb, 1), lambda i, k: (i, 0)),
            scratch_shapes=[pltpu.VMEM((tb, Mp), jnp.float32)],
        ),
        compiler_params=pltpu.CompilerParams(
            dimension_semantics=("parallel", "arbitrary")),
    )(x_flat, packed["W_diff"], packed["b_diff"], packed["scale_row"])

    ans1 = ans1[:, 0]
    ans = jnp.stack([1.0 - ans1, ans1], axis=-1)   # exact: sum(scale) == 1
    mask = ans1 > boundary                          # tiny XLA op outside kernel
    return mask, ans


if __name__ == "__main__":
    # Small shapes consistent with an image-classifier ensemble.
    B, C, H, W = 2, 4, 16, 16
    NUM_CLASSES = 2
    NUM_MODELS = 3
    D = C * H * W

    key = jax.random.PRNGKey(0)
    kx, kw, kb = jax.random.split(key, 3)

    x = jax.random.normal(kx, (B, C, H, W), dtype=jnp.float32)
    W_stack = jax.random.normal(kw, (NUM_MODELS, D, NUM_CLASSES),
                                dtype=jnp.float32) * 0.02
    b_stack = jax.random.normal(kb, (NUM_MODELS, NUM_CLASSES),
                                dtype=jnp.float32) * 0.1
    member_weights = [1.0, 2.0, 1.0]

    # Pack once (init time), reuse across forward calls.
    packed_f32 = pack_ensemble(W_stack, b_stack, member_weights,
                               compute_dtype=jnp.float32)
    mask, ans = ensemble_classifier_forward(x, packed_f32, boundary=0.75)
    jax.block_until_ready((mask, ans))

    # Reference check in plain JAX (same math as the PyTorch module).
    w_raw = jnp.asarray(member_weights, jnp.float32)
    w_ens = w_raw * (NUM_MODELS / jnp.sum(w_raw))
    x_flat = x.reshape(B, D)
    ref = jnp.zeros((B, NUM_CLASSES), jnp.float32)
    for m in range(NUM_MODELS):
        logits = x_flat @ W_stack[m] + b_stack[m]
        ref = ref + jax.nn.softmax(logits, axis=1) * (w_ens[m] / NUM_MODELS)
    ref_mask = ref[:, 1] > 0.75

    assert jnp.allclose(ans, ref, atol=1e-5), "ans mismatch"
    assert bool(jnp.all(mask == ref_mask)), "mask mismatch"

    # bf16 fast path (halved x/W HBM traffic; f32 accumulation), loose tol.
    packed_bf16 = pack_ensemble(W_stack, b_stack, member_weights,
                                compute_dtype=jnp.bfloat16)
    mask16, ans16 = ensemble_classifier_forward(x, packed_bf16, boundary=0.75)
    jax.block_until_ready((mask16, ans16))
    assert jnp.allclose(ans16, ref, atol=2e-2), "bf16 ans mismatch"

    print("KERNEL_OK")
</pallas_src>

<mosaic_0001>
module attributes {stable_mosaic.version = 11 : i64} {
  func.func @_ensemble_kernel(%arg0: i32, %arg1: i32, %arg2: memref<2x512xf32, #tpu.memory_space<vmem>>, %arg3: memref<512x128xf32, #tpu.memory_space<vmem>>, %arg4: memref<1x128xf32, #tpu.memory_space<vmem>>, %arg5: memref<1x128xf32, #tpu.memory_space<vmem>>, %arg6: memref<2x1xf32, #tpu.memory_space<vmem>>, %arg7: memref<2x128xf32, #tpu.memory_space<vmem>>) attributes {dimension_semantics = [#tpu.dimension_semantics<parallel>, #tpu.dimension_semantics<arbitrary>], iteration_bounds = array<i64: 1, 2>, scalar_prefetch = 0 : i64, scratch_operands = 1 : i64, tpu.core_type = #tpu.core_type<tc>, window_params = [{transform_indices = @transform_0, window_bounds = array<i64: 2, 512>}, {transform_indices = @transform_1, window_bounds = array<i64: 512, 128>}, {pipeline_mode = #tpu.pipeline_mode<synchronous>, transform_indices = @transform_2, window_bounds = array<i64: 1, 128>}, {pipeline_mode = #tpu.pipeline_mode<synchronous>, transform_indices = @transform_3, window_bounds = array<i64: 1, 128>}, {transform_indices = @transform_4, window_bounds = array<i64: 2, 1>}]} {
    %c0_i32 = arith.constant 0 : i32
    %0 = arith.cmpi eq, %arg1, %c0_i32 : i32
    %1 = arith.extui %0 : i1 to i32
    %c0_i32_0 = arith.constant 0 : i32
    %2 = arith.cmpi ne, %1, %c0_i32_0 : i32
    scf.if %2 {
      %cst_9 = arith.constant 0.000000e+00 : f32
      %12 = vector.broadcast %cst_9 : f32 to vector<2x128xf32>
      %c0_10 = arith.constant 0 : index
      %c0_11 = arith.constant 0 : index
      %13 = vector.load %arg7[%c0_10, %c0_11] : memref<2x128xf32, #tpu.memory_space<vmem>>, vector<2x128xf32>
      tpu.vector_store %arg7[%c0_10, %c0_11], %12 {strides = array<i32>} : memref<2x128xf32, #tpu.memory_space<vmem>>, vector<2x128xf32>,
    } else {
    }
    %c0 = arith.constant 0 : index
    %c0_1 = arith.constant 0 : index
    %3 = vector.load %arg2[%c0, %c0_1] : memref<2x512xf32, #tpu.memory_space<vmem>>, vector<2x512xf32>
    %c0_2 = arith.constant 0 : index
    %c0_3 = arith.constant 0 : index
    %4 = vector.load %arg7[%c0_2, %c0_3] : memref<2x128xf32, #tpu.memory_space<vmem>>, vector<2x128xf32>
    %c0_4 = arith.constant 0 : index
    %c0_5 = arith.constant 0 : index
    %5 = vector.load %arg3[%c0_4, %c0_5] : memref<512x128xf32, #tpu.memory_space<vmem>>, vector<512x128xf32>
    %cst = arith.constant dense<0.000000e+00> : vector<2x128xf32>
    %6 = tpu.matmul %3, %5, %cst {dimension_numbers = #tpu.dot_dimension_numbers<[1], [0], [0], [1], [0, 0, 1, 1], [], []>} : vector<2x512xf32>, vector<512x128xf32>, vector<2x128xf32> -> vector<2x128xf32>
    %7 = arith.addf %4, %6 : vector<2x128xf32>
    %c0_6 = arith.constant 0 : index
    %c0_7 = arith.constant 0 : index
    %8 = vector.load %arg7[%c0_6, %c0_7] : memref<2x128xf32, #tpu.memory_space<vmem>>, vector<2x128xf32>
    tpu.vector_store %arg7[%c0_6, %c0_7], %7 {strides = array<i32>} : memref<2x128xf32, #tpu.memory_space<vmem>>, vector<2x128xf32>,
    %c1_i32 = arith.constant 1 : i32
    %9 = arith.cmpi eq, %arg1, %c1_i32 : i32
    %10 = arith.extui %9 : i1 to i32
    %c0_i32_8 = arith.constant 0 : i32
    %11 = arith.cmpi ne, %10, %c0_i32_8 : i32
    scf.if %11 {
      %c0_9 = arith.constant 0 : index
      %c0_10 = arith.constant 0 : index
      %12 = vector.load %arg7[%c0_9, %c0_10] : memref<2x128xf32, #tpu.memory_space<vmem>>, vector<2x128xf32>
      %c0_11 = arith.constant 0 : index
      %c0_12 = arith.constant 0 : index
      %13 = vector.load %arg4[%c0_11, %c0_12] : memref<1x128xf32, #tpu.memory_space<vmem>>, vector<1x128xf32>
      %14 = vector.broadcast %13 : vector<1x128xf32> to vector<2x128xf32>
      %15 = arith.addf %12, %14 : vector<2x128xf32>
      %16 = arith.negf %15 : vector<2x128xf32>
      %17 = math.exp %16 : vector<2x128xf32>
      %cst_13 = arith.constant 1.000000e+00 : f32
      %18 = vector.broadcast %cst_13 : f32 to vector<2x128xf32>
      %19 = arith.addf %18, %17 : vector<2x128xf32>
      %20 = arith.divf %18, %19 : vector<2x128xf32>
      %c0_14 = arith.constant 0 : index
      %c0_15 = arith.constant 0 : index
      %21 = vector.load %arg5[%c0_14, %c0_15] : memref<1x128xf32, #tpu.memory_space<vmem>>, vector<1x128xf32>
      %22 = vector.broadcast %21 : vector<1x128xf32> to vector<2x128xf32>
      %23 = arith.mulf %20, %22 : vector<2x128xf32>
      %cst_16 = arith.constant dense<0.000000e+00> : vector<2xf32>
      %24 = vector.multi_reduction <add>, %23, %cst_16 [1] : vector<2x128xf32> to vector<2xf32>
      %25 = vector.shape_cast %24 : vector<2xf32> to vector<2x1xf32>
      %c0_17 = arith.constant 0 : index
      %c0_18 = arith.constant 0 : index
      %26 = vector.load %arg6[%c0_17, %c0_18] : memref<2x1xf32, #tpu.memory_space<vmem>>, vector<2x1xf32>
      tpu.vector_store %arg6[%c0_17, %c0_18], %25 {strides = array<i32>} : memref<2x1xf32, #tpu.memory_space<vmem>>, vector<2x1xf32>,
    } else {
    }
    return
  }
  func.func @transform_0(%arg0: i32, %arg1: i32) -> (i32, i32) {
    %c0_i32 = arith.constant 0 : i32
    return %arg0, %arg1 : i32, i32
  }
  func.func @transform_1(%arg0: i32, %arg1: i32) -> (i32, i32) {
    %c0_i32 = arith.constant 0 : i32
    %c0_i32_0 = arith.constant 0 : i32
    return %arg1, %c0_i32 : i32, i32
  }
  func.func @transform_2(%arg0: i32, %arg1: i32) -> (i32, i32) {
    %c0_i32 = arith.constant 0 : i32
    %c0_i32_0 = arith.constant 0 : i32
    %c0_i32_1 = arith.constant 0 : i32
    return %c0_i32, %c0_i32_0 : i32, i32
  }
  func.func @transform_3(%arg0: i32, %arg1: i32) -> (i32, i32) {
    %c0_i32 = arith.constant 0 : i32
    %c0_i32_0 = arith.constant 0 : i32
    %c0_i32_1 = arith.constant 0 : i32
    return %c0_i32, %c0_i32_0 : i32, i32
  }
  func.func @transform_4(%arg0: i32, %arg1: i32) -> (i32, i32) {
    %c0_i32 = arith.constant 0 : i32
    %c0_i32_0 = arith.constant 0 : i32
    return %arg0, %c0_i32 : i32, i32
  }
}

</mosaic_0001>

<llo_original>
// kernel: tpu_custom_call.1
$region0: #{tpu_custom_call.1}
  #allocation0 [shape = 'u32[]', space=smem, size = 0x4, offset = 0x4, fixed_abs, tag = 'smem constant byte address 0x4 - core index']
  #allocation1 [shape = 'u32[144,128]{1,0:T(1,128)}', space=vmem, size = 0x12000, scoped, tag = 'internal scratch']
  #allocation2 [shape = 'f32[2,128]{1,0:T(2,128)}', space=vmem, size = 0x400, scoped, tag = 'scratch operand']
  %s0 = inlined_call_operand.hbm [shape: f32[2,1024], index: 0, kind: input, shape index: {}]
  %s1 = inlined_call_operand.hbm [shape: f32[1024,128], index: 1, kind: input, shape index: {}]
  %s2 = inlined_call_operand.vmem [shape: f32[1,128], index: 2, kind: input, shape index: {}]
  %s3 = inlined_call_operand.vmem [shape: f32[1,128], index: 3, kind: input, shape index: {}]
  %s4 = inlined_call_operand.vmem [shape: f32[2,1], index: 4, kind: output, shape index: {}]
  %s5 = sld [smem:[#allocation0]]
  $region65: #{tpu_custom_call.1} parent=0
    _
  %s7 = ssub.s32 1, %s5
  %s8 = scalar_select 0, %s7, %s5
  $region1: #{tpu_custom_call.1} parent=0
    #allocation3 [shape = 'u8[8192]{0}', space=vmem, size = 0x2000, scoped, tag = 'input window, operand 0']
    #allocation4 [shape = 's32[2]{0}', space=sflag, size = 0x8, scoped, tag = 'scoped memory for tpu_custom_call.1']
    #allocation5 [shape = 'u8[524288]{0}', space=vmem, size = 0x80000, scoped, tag = 'input window, operand 1']
    #allocation6 [shape = 's32[2]{0}', space=sflag, size = 0x8, scoped, tag = 'scoped memory for tpu_custom_call.1']
    %9 = vsyncpa [#allocation4], 0
    %s10 = scalar_lea.sflag [#allocation4], 1
    %11 = vsyncpa %s10, 0
    %12 = vsyncpa [#allocation6], 0
    %s13 = scalar_lea.sflag [#allocation6], 1
    %14 = vsyncpa %s13, 0
    loop: start=0, step=1, limit=4
    $region2: #{tpu_custom_call.1} parent=1 // loop_pre_header
      _
    $region3: #{tpu_custom_call.1} parent=1 // loop_header
      %s16 = sphi 0, %s20
      %p17 = scmp.ge.s32.totalorder %s16, 4
      %s23 = sphi 0, %s35
      %s24 = sphi 0, %s31
      %s25 = sphi 0, %s23
      %s26 = sphi 0, %s24
      %s27 = sphi 0, %s25
      %s28 = sphi 0, %s26
      %s40 = sphi 0, %s42
      %s43 = sphi 0, %s40
      %s44 = sphi 0, %s43
      %s60 = sphi 0, %s44
      %s66 = sphi 0, %s68
      %s69 = sphi 0, %s66
      %s70 = sphi 0, %s69
      %s86 = sphi 0, %s70
      %s90 = sphi 0, %s90
      %s92 = sphi 0, %s90
      %s93 = sphi 0, %s92
      %s107 = sphi 0, %s93
      %s111 = sphi 0, %s111
      %s113 = sphi 0, %s111
      %s114 = sphi 0, %s113
      %s128 = sphi 0, %s114
      %s134 = sphi 0, %s136
      %s137 = sphi 0, %s134
      %s138 = sphi 0, %s137
      %s154 = sphi 0, %s138
    $region4: #{tpu_custom_call.1} parent=1 // loop_header_branch
      %19 = sbr.rel (%p17) target = $region8
    $region5: #{tpu_custom_call.1} parent=1 // loop_body
      %s21 = ssub.s32 %s16, 1
      %s22 = ssub.s32 %s16, 2
      %s29 = sadd.s32 1, %s24
      %p30 = scmp.ge.s32.totalorder %s29, 2
      %s31 = scalar_select %p30, 0, %s29
      %s32 = sadd.s32 1, %s23
      %s33 = scalar_select %p30, %s32, %s23
      %p34 = scmp.ge.s32.totalorder %s33, 1
      %s35 = scalar_select %p34, 0, %s33
      %s36 = ssub.s32 %s23, %s35
      %s37 = ssub.s32 %s24, %s31
      %s38 = sor.u32 %s36, %s37
      %p39 = scmp.eq.s32.totalorder %s38, 0
      %s41 = sadd.s32 %s40, 1
      %s42 = scalar_select %p39, %s40, %s41
      %p45 = pneg %p39
      %p46 = scmp.eq.s32.totalorder %s16, 1
      %p47 = por %p45, %p46
      %p48 = scmp.ne.s32.totalorder %s40, %s43
      %p49 = scmp.eq.s32.totalorder %s16, 0
      %p50 = por %p48, %p49
      %p51 = scmp.ne.s32.totalorder %s40, %s43
      %p52 = scmp.eq.s32.totalorder %s21, 1
      %p53 = por %p51, %p52
      %p54 = scmp.ne.s32.totalorder %s43, %s44
      %p55 = scmp.eq.s32.totalorder %s21, 0
      %p56 = por %p54, %p55
      %p57 = scmp.ne.s32.totalorder %s43, %s44
      %p58 = scmp.eq.s32.totalorder %s22, 1
      %p59 = por %p57, %p58
      %p61 = scmp.ne.s32.totalorder %s44, %s60
      %p62 = scmp.eq.s32.totalorder %s22, 0
      %p63 = por %p61, %p62
      %s64 = ssub.s32 %s24, %s31
      %p65 = scmp.eq.s32.totalorder %s64, 0
      %s67 = sadd.s32 %s66, 1
      %s68 = scalar_select %p65, %s66, %s67
      %p71 = pneg %p65
      %p72 = scmp.eq.s32.totalorder %s16, 1
      %p73 = por %p71, %p72
      %p74 = scmp.ne.s32.totalorder %s66, %s69
      %p75 = scmp.eq.s32.totalorder %s16, 0
      %p76 = por %p74, %p75
      %p77 = scmp.ne.s32.totalorder %s66, %s69
      %p78 = scmp.eq.s32.totalorder %s21, 1
      %p79 = por %p77, %p78
      %p80 = scmp.ne.s32.totalorder %s69, %s70
      %p81 = scmp.eq.s32.totalorder %s21, 0
      %p82 = por %p80, %p81
      %p83 = scmp.ne.s32.totalorder %s69, %s70
      %p84 = scmp.eq.s32.totalorder %s22, 1
      %p85 = por %p83, %p84
      %p87 = scmp.ne.s32.totalorder %s70, %s86
      %p88 = scmp.eq.s32.totalorder %s22, 0
      %p89 = por %p87, %p88
      %s91 = sadd.s32 %s90, 1
      %p94 = scmp.eq.s32.totalorder %s16, 1
      %p95 = scmp.ne.s32.totalorder %s90, %s92
      %p96 = scmp.eq.s32.totalorder %s16, 0
      %p97 = por %p95, %p96
      %p98 = scmp.ne.s32.totalorder %s90, %s92
      %p99 = scmp.eq.s32.totalorder %s21, 1
      %p100 = por %p98, %p99
      %p101 = scmp.ne.s32.totalorder %s92, %s93
      %p102 = scmp.eq.s32.totalorder %s21, 0
      %p103 = por %p101, %p102
      %p104 = scmp.ne.s32.totalorder %s92, %s93
      %p105 = scmp.eq.s32.totalorder %s22, 1
      %p106 = por %p104, %p105
      %p108 = scmp.ne.s32.totalorder %s93, %s107
      %p109 = scmp.eq.s32.totalorder %s22, 0
      %p110 = por %p108, %p109
      %s112 = sadd.s32 %s111, 1
      %p115 = scmp.eq.s32.totalorder %s16, 1
      %p116 = scmp.ne.s32.totalorder %s111, %s113
      %p117 = scmp.eq.s32.totalorder %s16, 0
      %p118 = por %p116, %p117
      %p119 = scmp.ne.s32.totalorder %s111, %s113
      %p120 = scmp.eq.s32.totalorder %s21, 1
      %p121 = por %p119, %p120
      %p122 = scmp.ne.s32.totalorder %s113, %s114
      %p123 = scmp.eq.s32.totalorder %s21, 0
      %p124 = por %p122, %p123
      %p125 = scmp.ne.s32.totalorder %s113, %s114
      %p126 = scmp.eq.s32.totalorder %s22, 1
      %p127 = por %p125, %p126
      %p129 = scmp.ne.s32.totalorder %s114, %s128
      %p130 = scmp.eq.s32.totalorder %s22, 0
      %p131 = por %p129, %p130
      %s132 = ssub.s32 %s23, %s35
      %p133 = scmp.eq.s32.totalorder %s132, 0
      %s135 = sadd.s32 %s134, 1
      %s136 = scalar_select %p133, %s134, %s135
      %p139 = pneg %p133
      %p140 = scmp.eq.s32.totalorder %s16, 1
      %p141 = por %p139, %p140
      %p142 = scmp.ne.s32.totalorder %s134, %s137
      %p143 = scmp.eq.s32.totalorder %s16, 0
      %p144 = por %p142, %p143
      %p145 = scmp.ne.s32.totalorder %s134, %s137
      %p146 = scmp.eq.s32.totalorder %s21, 1
      %p147 = por %p145, %p146
      %p148 = scmp.ne.s32.totalorder %s137, %s138
      %p149 = scmp.eq.s32.totalorder %s21, 0
      %p150 = por %p148, %p149
      %p151 = scmp.ne.s32.totalorder %s137, %s138
      %p152 = scmp.eq.s32.totalorder %s22, 1
      %p153 = por %p151, %p152
      %p155 = scmp.ne.s32.totalorder %s138, %s154
      %p156 = scmp.eq.s32.totalorder %s22, 0
      %p157 = por %p155, %p156
      %p158 = scmp.le.s32.totalorder 1, %s16
      %p159 = scmp.lt.s32.totalorder %s16, 3
      %p160 = pnand %p158, %p159
      %p161 = pneg %p160
      // Predicated region
      $region9: #{tpu_custom_call.1} parent=5 // pred_check
        _
      $region10: #{tpu_custom_call.1} parent=5 // pred_check_branch
        %163 = sbr.rel (%p160) target = $region12
      $region11: #{tpu_custom_call.1} parent=5 // pred_region
        %s164 = ssub.s32 %s16, 1
        // Predicated region
        $region13: #{tpu_custom_call.1} parent=11 // pred_check
          %p165 = pneg %p103
        $region14: #{tpu_custom_call.1} parent=11 // pred_check_branch
          %167 = sbr.rel (%p165) target = $region16
        $region15: #{tpu_custom_call.1} parent=11 // pred_region
          _
        $region16: #{tpu_custom_call.1} parent=11 // pred_fallthru
          _
        // Predicated region
        $region17: #{tpu_custom_call.1} parent=11 // pred_check
          %p168 = pneg %p124
        $region18: #{tpu_custom_call.1} parent=11 // pred_check_branch
          %170 = sbr.rel (%p168) target = $region20
        $region19: #{tpu_custom_call.1} parent=11 // pred_region
          _
        $region20: #{tpu_custom_call.1} parent=11 // pred_fallthru
          _
      $region12: #{tpu_custom_call.1} parent=5 // pred_fallthru
        _
      %p171 = scmp.lt.s32.totalorder %s16, 2
      // Predicated region
      $region21: #{tpu_custom_call.1} parent=5 // pred_check
        %p172 = pneg %p171
      $region22: #{tpu_custom_call.1} parent=5 // pred_check_branch
        %174 = sbr.rel (%p172) target = $region24
      $region23: #{tpu_custom_call.1} parent=5 // pred_region
        // Predicated region
        $region25: #{tpu_custom_call.1} parent=23 // pred_check
          %p175 = pneg %p50
        $region26: #{tpu_custom_call.1} parent=23 // pred_check_branch
          %177 = sbr.rel (%p175) target = $region28
        $region27: #{tpu_custom_call.1} parent=23 // pred_region
          %s178 = sand.u32 %s40, 1
          %s179 = scalar_lea.sflag [#allocation4], %s178
          %s180 = sand.u32 %s40, 1
          %s181 = smul.addr %s180, 8
          %s182 = scalar_lea.vmem [#allocation3], %s181
          %s183 = smul.u32 4, %s24
          %s185 = ssub.s32 128, 128
          %186 = vsyncadd %s179, %s185
          %s187 = smul.addr %s23, 8
          %s188 = sadd.s32 %s183, %s187
          %s189 = smul.addr %s188, 32
          %s190 = scalar_lea.hbm %s0, %s189
          %s192 = sshll.u32 %s182, 4
          %s193 = int_to_ptr.vmem [resolvable:$true] %s192
          %195 = dma.hbm_to_vmem [thread:$0]  %s190, 128, %s193, %s179
        $region28: #{tpu_custom_call.1} parent=23 // pred_fallthru
          _
        // Predicated region
        $region29: #{tpu_custom_call.1} parent=23 // pred_check
          %p196 = pneg %p76
        $region30: #{tpu_custom_call.1} parent=23 // pred_check_branch
          %198 = sbr.rel (%p196) target = $region32
        $region31: #{tpu_custom_call.1} parent=23 // pred_region
          %s199 = sand.u32 %s66, 1
          %s200 = scalar_lea.sflag [#allocation6], %s199
          %s201 = sand.u32 %s66, 1
          %s202 = smul.addr %s201, 512
          %s203 = scalar_lea.vmem [#allocation5], %s202
          %s204 = smul.u32 64, %s24
          %s206 = ssub.s32 8192, 8192
          %207 = vsyncadd %s200, %s206
          %s208 = smul.addr %s204, 128
          %s209 = scalar_lea.hbm %s1, %s208
          %s210 = sshll.u32 %s203, 4
          %s211 = int_to_ptr.vmem [resolvable:$true] %s210
          %216 = dma.hbm_to_vmem [thread:$0]  %s209, 8192, %s211, %s200, 128, 128, 8
        $region32: #{tpu_custom_call.1} parent=23 // pred_fallthru
          _
      $region24: #{tpu_custom_call.1} parent=5 // pred_fallthru
        _
      %p217 = scmp.le.s32.totalorder 1, %s16
      %p218 = scmp.lt.s32.totalorder %s16, 3
      %p219 = pnand %p217, %p218
      %p220 = pneg %p219
      // Predicated region
      $region33: #{tpu_custom_call.1} parent=5 // pred_check
        _
      $region34: #{tpu_custom_call.1} parent=5 // pred_check_branch
        %222 = sbr.rel (%p219) target = $region36
      $region35: #{tpu_custom_call.1} parent=5 // pred_region
        %s223 = ssub.s32 %s16, 1
        %s224 = sand.u32 %s43, 1
        %s225 = scalar_lea.sflag [#allocation4], %s224
        %s226 = sand.u32 %s43, 1
        %s227 = smul.addr %s226, 8
        %s228 = scalar_lea.vmem [#allocation3], %s227
        // Predicated region
        $region37: #{tpu_custom_call.1} parent=35 // pred_check
          %p229 = pneg %p56
        $region38: #{tpu_custom_call.1} parent=35 // pred_check_branch
          %231 = sbr.rel (%p229) target = $region40
        $region39: #{tpu_custom_call.1} parent=35 // pred_region
          %232 = dma.done %s225, 128
        $region40: #{tpu_custom_call.1} parent=35 // pred_fallthru
          _
        %s233 = sand.u32 %s69, 1
        %s234 = scalar_lea.sflag [#allocation6], %s233
        %s235 = sand.u32 %s69, 1
        %s236 = smul.addr %s235, 512
        %s237 = scalar_lea.vmem [#allocation5], %s236
        // Predicated region
        $region41: #{tpu_custom_call.1} parent=35 // pred_check
          %p238 = pneg %p82
        $region42: #{tpu_custom_call.1} parent=35 // pred_check_branch
          %240 = sbr.rel (%p238) target = $region44
        $region43: #{tpu_custom_call.1} parent=35 // pred_region
          %241 = dma.done %s234, 8192
        $region44: #{tpu_custom_call.1} parent=35 // pred_fallthru
          _
        %s242 = sand.u32 %s43, 1
        %s243 = scalar_lea.sflag [#allocation4], %s242
        %s244 = sand.u32 %s43, 1
        %s245 = smul.addr %s244, 8
        %s246 = scalar_lea.vmem [#allocation3], %s245
        %p247 = pneg %p56
        %p248 = pneg %p53
        %s249 = sand.u32 %s69, 1
        %s250 = scalar_lea.sflag [#allocation6], %s249
        %s251 = sand.u32 %s69, 1
        %s252 = smul.addr %s251, 512
        %s253 = scalar_lea.vmem [#allocation5], %s252
        %p254 = pneg %p82
        %p255 = pneg %p79
        %p256 = pneg %p103
        %p257 = pneg %p100
        %p258 = pneg %p124
        %p259 = pneg %p121
        %p260 = pneg %p150
        %p261 = pneg %p147
        %p262 = scmp.lt.s32.totalorder %s25, 0
        %s263 = scalar_select %p262, %s25, 0
        %s264 = smul.addr %s263, 2
        %s265 = scalar_lea.vmem %s4, %s264
        %s266 = smul.u32 4, %s26
        %s267 = smul.u32 64, %s26
        %p268 = scmp.lt.s32.totalorder %s25, 0
        %s269 = scalar_select %p268, %s25, 0
        %s270 = smul.addr %s269, 2
        %s271 = scalar_lea.vmem %s4, %s270
        %p272 = scmp.eq.s32.totalorder %s26, 0
        // Predicated region
        $region45: #{tpu_custom_call.1} parent=35 // pred_check
          %p273 = pneg %p272
        $region46: #{tpu_custom_call.1} parent=35 // pred_check_branch
          %275 = sbr.rel (%p273) target = $region48
        $region47: #{tpu_custom_call.1} parent=35 // pred_region
          %276 = vst [vmem:[#allocation2] sm:$0x3] 0.0
        $region48: #{tpu_custom_call.1} parent=35 // pred_fallthru
          _
        %v277 = vld [vmem:[%s228] sm:$0xff]
        %v278 = vld [vmem:[#allocation2] sm:$0x3]
        %v279 = vld [vmem:[%s237] sm:$0xff]
        %v280 = vld [vmem:[%s237 + $0x8] sm:$0xff]
        %v281 = vld [vmem:[%s237 + $0x10] sm:$0xff]
        %v282 = vld [vmem:[%s237 + $0x18] sm:$0xff]
        %v283 = vld [vmem:[%s237 + $0x20] sm:$0xff]
        %v284 = vld [vmem:[%s237 + $0x28] sm:$0xff]
        %v285 = vld [vmem:[%s237 + $0x30] sm:$0xff]
        %v286 = vld [vmem:[%s237 + $0x38] sm:$0xff]
        %v287 = vld [vmem:[%s237 + $0x40] sm:$0xff]
        %v288 = vld [vmem:[%s237 + $0x48] sm:$0xff]
        %v289 = vld [vmem:[%s237 + $0x50] sm:$0xff]
        %v290 = vld [vmem:[%s237 + $0x58] sm:$0xff]
        %v291 = vld [vmem:[%s237 + $0x60] sm:$0xff]
        %v292 = vld [vmem:[%s237 + $0x68] sm:$0xff]
        %v293 = vld [vmem:[%s237 + $0x70] sm:$0xff]
        %v294 = vld [vmem:[%s237 + $0x78] sm:$0xff]
        %v295 = vld [vmem:[%s237 + $0x80] sm:$0xff]
        %v296 = vld [vmem:[%s237 + $0x88] sm:$0xff]
        %v297 = vld [vmem:[%s237 + $0x90] sm:$0xff]
        %v298 = vld [vmem:[%s237 + $0x98] sm:$0xff]
        %v299 = vld [vmem:[%s237 + $0xa0] sm:$0xff]
        %v300 = vld [vmem:[%s237 + $0xa8] sm:$0xff]
        %v301 = vld [vmem:[%s237 + $0xb0] sm:$0xff]
        %v302 = vld [vmem:[%s237 + $0xb8] sm:$0xff]
        %v303 = vld [vmem:[%s237 + $0xc0] sm:$0xff]
        %v304 = vld [vmem:[%s237 + $0xc8] sm:$0xff]
        %v305 = vld [vmem:[%s237 + $0xd0] sm:$0xff]
        %v306 = vld [vmem:[%s237 + $0xd8] sm:$0xff]
        %v307 = vld [vmem:[%s237 + $0xe0] sm:$0xff]
        %v308 = vld [vmem:[%s237 + $0xe8] sm:$0xff]
        %v309 = vld [vmem:[%s237 + $0xf0] sm:$0xff]
        %v310 = vld [vmem:[%s237 + $0xf8] sm:$0xff]
        %v311 = vld [vmem:[%s237 + $0x100] sm:$0xff]
        %v312 = vld [vmem:[%s237 + $0x108] sm:$0xff]
        %v313 = vld [vmem:[%s237 + $0x110] sm:$0xff]
        %v314 = vld [vmem:[%s237 + $0x118] sm:$0xff]
        %v315 = vld [vmem:[%s237 + $0x120] sm:$0xff]
        %v316 = vld [vmem:[%s237 + $0x128] sm:$0xff]
        %v317 = vld [vmem:[%s237 + $0x130] sm:$0xff]
        %v318 = vld [vmem:[%s237 + $0x138] sm:$0xff]
        %v319 = vld [vmem:[%s237 + $0x140] sm:$0xff]
        %v320 = vld [vmem:[%s237 + $0x148] sm:$0xff]
        %v321 = vld [vmem:[%s237 + $0x150] sm:$0xff]
        %v322 = vld [vmem:[%s237 + $0x158] sm:$0xff]
        %v323 = vld [vmem:[%s237 + $0x160] sm:$0xff]
        %v324 = vld [vmem:[%s237 + $0x168] sm:$0xff]
        %v325 = vld [vmem:[%s237 + $0x170] sm:$0xff]
        %v326 = vld [vmem:[%s237 + $0x178] sm:$0xff]
        %v327 = vld [vmem:[%s237 + $0x180] sm:$0xff]
        %v328 = vld [vmem:[%s237 + $0x188] sm:$0xff]
        %v329 = vld [vmem:[%s237 + $0x190] sm:$0xff]
        %v330 = vld [vmem:[%s237 + $0x198] sm:$0xff]
        %v331 = vld [vmem:[%s237 + $0x1a0] sm:$0xff]
        %v332 = vld [vmem:[%s237 + $0x1a8] sm:$0xff]
        %v333 = vld [vmem:[%s237 + $0x1b0] sm:$0xff]
        %v334 = vld [vmem:[%s237 + $0x1b8] sm:$0xff]
        %v335 = vld [vmem:[%s237 + $0x1c0] sm:$0xff]
        %v336 = vld [vmem:[%s237 + $0x1c8] sm:$0xff]
        %v337 = vld [vmem:[%s237 + $0x1d0] sm:$0xff]
        %v338 = vld [vmem:[%s237 + $0x1d8] sm:$0xff]
        %v339 = vld [vmem:[%s237 + $0x1e0] sm:$0xff]
        %v340 = vld [vmem:[%s237 + $0x1e8] sm:$0xff]
        %v341 = vld [vmem:[%s237 + $0x1f0] sm:$0xff]
        %v342 = vld [vmem:[%s237 + $0x1f8] sm:$0xff]
        %v344 = vcombine.high %v277, %v277
        %v346 = vunpack.c.l.s4 1983009808
        %v347 = vunpack.c.0.s8 %v346
        %v348 = vlaneseq
        %v349 = vshrl.u32 %v348, 7
        %v350 = vsub.s32 %v347, %v349
        %v351 = vrot.slane %v277, %v350
        %v353 = vunpack.c.l.s4 1983009808
        %v354 = vunpack.c.0.s8 %v353
        %v355 = vlaneseq
        %v356 = vshrl.u32 %v355, 7
        %v357 = vsub.s32 %v354, %v356
        %v358 = vrot.slane %v344, %v357
        %v359 = vcombine.high %v351, %v351
        %v360 = vcombine.high %v358, %v358
        %365 = vmatprep.subr.mxu0 0.0
        %366 = vmatpush1.msra.mxu0 %v294
        %367 = vmatprep.subr.mxu0 0.0
        %368 = vmatpush1.msra.mxu0 %v293
        %369 = vmatprep.subr.mxu0 0.0
        %370 = vmatpush1.msra.mxu0 %v292
        %371 = vmatprep.subr.mxu0 0.0
        %372 = vmatpush1.msra.mxu0 %v291
        %373 = vmatprep.subr.mxu0 0.0
        %374 = vmatpush1.msra.mxu0 %v290
        %375 = vmatprep.subr.mxu0 0.0
        %376 = vmatpush1.msra.mxu0 %v289
        %377 = vmatprep.subr.mxu0 0.0
        %378 = vmatpush1.msra.mxu0 %v288
        %379 = vmatprep.subr.mxu0 0.0
        %380 = vmatpush1.msra.mxu0 %v287
        %381 = vmatprep.subr.mxu0 0.0
        %382 = vmatpush1.msra.mxu0 %v286
        %383 = vmatprep.subr.mxu0 0.0
        %384 = vmatpush1.msra.mxu0 %v285
        %385 = vmatprep.subr.mxu0 0.0
        %386 = vmatpush1.msra.mxu0 %v284
        %387 = vmatprep.subr.mxu0 0.0
        %388 = vmatpush1.msra.mxu0 %v283
        %389 = vmatprep.subr.mxu0 0.0
        %390 = vmatpush1.msra.mxu0 %v282
        %391 = vmatprep.subr.mxu0 0.0
        %392 = vmatpush1.msra.mxu0 %v281
        %393 = vmatprep.subr.mxu0 0.0
        %394 = vmatpush1.msra.mxu0 %v280
        %395 = vmatprep.subr.mxu0 0.0
        %396 = vmatpush1.msra.mxu0 %v279
        %397 = vmatprep.subr.mxu0 0.0
        %398 = vmatpush2.msra.mxu0 %v310
        %399 = vmatprep.subr.mxu0 0.0
        %400 = vmatpush2.msra.mxu0 %v309
        %401 = vmatprep.subr.mxu0 0.0
        %402 = vmatpush2.msra.mxu0 %v308
        %403 = vmatprep.subr.mxu0 0.0
        %404 = vmatpush2.msra.mxu0 %v307
        %405 = vmatprep.subr.mxu0 0.0
        %406 = vmatpush2.msra.mxu0 %v306
        %407 = vmatprep.subr.mxu0 0.0
        %408 = vmatpush2.msra.mxu0 %v305
        %409 = vmatprep.subr.mxu0 0.0
        %410 = vmatpush2.msra.mxu0 %v304
        %411 = vmatprep.subr.mxu0 0.0
        %412 = vmatpush2.msra.mxu0 %v303
        %413 = vmatprep.subr.mxu0 0.0
        %414 = vmatpush2.msra.mxu0 %v302
        %415 = vmatprep.subr.mxu0 0.0
        %416 = vmatpush2.msra.mxu0 %v301
        %417 = vmatprep.subr.mxu0 0.0
        %418 = vmatpush2.msra.mxu0 %v300
        %419 = vmatprep.subr.mxu0 0.0
        %420 = vmatpush2.msra.mxu0 %v299
        %421 = vmatprep.subr.mxu0 0.0
        %422 = vmatpush2.msra.mxu0 %v298
        %423 = vmatprep.subr.mxu0 0.0
        %424 = vmatpush2.msra.mxu0 %v297
        %425 = vmatprep.subr.mxu0 0.0
        %426 = vmatpush2.msra.mxu0 %v296
        %427 = vmatprep.subr.mxu0 0.0
        %428 = vmatpush2.msra.mxu0 %v295
        %429 = vmatprep.mubr.f32.mxu0 %v359
        %430 = vmatmul.mubr.f32.gmra.mxu0 %v351
        %v431 = vpop.f32.mrf.mxu0
        %v432 = vadd.f32 0.0, %v431
        %v433 = vpop.f32.mrf.mxu0
        %434 = vdwg.mxu0
        %435 = vmatprep.subr.mxu0 0.0
        %436 = vmatpush1.msra.mxu0 %v326
        %437 = vmatprep.subr.mxu0 0.0
        %438 = vmatpush1.msra.mxu0 %v325
        %439 = vmatprep.subr.mxu0 0.0
        %440 = vmatpush1.msra.mxu0 %v324
        %441 = vmatprep.subr.mxu0 0.0
        %442 = vmatpush1.msra.mxu0 %v323
        %443 = vmatprep.subr.mxu0 0.0
        %444 = vmatpush1.msra.mxu0 %v322
        %445 = vmatprep.subr.mxu0 0.0
        %446 = vmatpush1.msra.mxu0 %v321
        %447 = vmatprep.subr.mxu0 0.0
        %448 = vmatpush1.msra.mxu0 %v320
        %449 = vmatprep.subr.mxu0 0.0
        %450 = vmatpush1.msra.mxu0 %v319
        %451 = vmatprep.subr.mxu0 0.0
        %452 = vmatpush1.msra.mxu0 %v318
        %453 = vmatprep.subr.mxu0 0.0
        %454 = vmatpush1.msra.mxu0 %v317
        %455 = vmatprep.subr.mxu0 0.0
        %456 = vmatpush1.msra.mxu0 %v316
        %457 = vmatprep.subr.mxu0 0.0
        %458 = vmatpush1.msra.mxu0 %v315
        %459 = vmatprep.subr.mxu0 0.0
        %460 = vmatpush1.msra.mxu0 %v314
        %461 = vmatprep.subr.mxu0 0.0
        %462 = vmatpush1.msra.mxu0 %v313
        %463 = vmatprep.subr.mxu0 0.0
        %464 = vmatpush1.msra.mxu0 %v312
        %465 = vmatprep.subr.mxu0 0.0
        %466 = vmatpush1.msra.mxu0 %v311
        %467 = vmatprep.subr.mxu0 0.0
        %468 = vmatpush2.msra.mxu0 %v342
        %469 = vmatprep.subr.mxu0 0.0
        %470 = vmatpush2.msra.mxu0 %v341
        %471 = vmatprep.subr.mxu0 0.0
        %472 = vmatpush2.msra.mxu0 %v340
        %473 = vmatprep.subr.mxu0 0.0
        %474 = vmatpush2.msra.mxu0 %v339
        %475 = vmatprep.subr.mxu0 0.0
        %476 = vmatpush2.msra.mxu0 %v338
        %477 = vmatprep.subr.mxu0 0.0
        %478 = vmatpush2.msra.mxu0 %v337
        %479 = vmatprep.subr.mxu0 0.0
        %480 = vmatpush2.msra.mxu0 %v336
        %481 = vmatprep.subr.mxu0 0.0
        %482 = vmatpush2.msra.mxu0 %v335
        %483 = vmatprep.subr.mxu0 0.0
        %484 = vmatpush2.msra.mxu0 %v334
        %485 = vmatprep.subr.mxu0 0.0
        %486 = vmatpush2.msra.mxu0 %v333
        %487 = vmatprep.subr.mxu0 0.0
        %488 = vmatpush2.msra.mxu0 %v332
        %489 = vmatprep.subr.mxu0 0.0
        %490 = vmatpush2.msra.mxu0 %v331
        %491 = vmatprep.subr.mxu0 0.0
        %492 = vmatpush2.msra.mxu0 %v330
        %493 = vmatprep.subr.mxu0 0.0
        %494 = vmatpush2.msra.mxu0 %v329
        %495 = vmatprep.subr.mxu0 0.0
        %496 = vmatpush2.msra.mxu0 %v328
        %497 = vmatprep.subr.mxu0 0.0
        %498 = vmatpush2.msra.mxu0 %v327
        %499 = vmatprep.mubr.f32.mxu0 %v360
        %500 = vmatmul.mubr.f32.gmra.mxu0 %v358
        %v501 = vpop.f32.mrf.mxu0
        %v502 = vadd.f32 %v432, %v501
        %v503 = vpop.f32.mrf.mxu0
        %504 = vdwg.mxu0
        %v505 = vadd.f32 %v278, %v502
        %506 = vst [vmem:[#allocation2] sm:$0x3] %v505
        %p507 = scmp.eq.s32.totalorder %s26, 1
        // Predicated region
        $region49: #{tpu_custom_call.1} parent=35 // pred_check
          %p508 = pneg %p507
        $region50: #{tpu_custom_call.1} parent=35 // pred_check_branch
          %510 = sbr.rel (%p508) target = $region52
        $region51: #{tpu_custom_call.1} parent=35 // pred_region
          %v511 = vld [vmem:[#allocation2] sm:$0x3]
          %v512 = vld [vmem:[%s2] sm:$0x1]
          %v514 = vlaneseq
          %v515 = vshrl.u32 %v514, 7
          %v516 = vsub.s32 0, %v515
          %v517 = vrot.slane %v512, %v516
          %v519 = vadd.f32 %v511, %v517
          %v520 = vxor.u32 %v519, 2147483648
          %v521 = vmul.f32 %v520, 1.442695
          %v522 = vpow.pop %v521
          %v523 = vadd.f32 %v522, 1.0
          %v524 = vrcp.pop %v523
          %v525 = vmul.f32 1.0, %v524
          %v526 = vld [vmem:[%s3] sm:$0x1]
          %v528 = vlaneseq
          %v529 = vshrl.u32 %v528, 7
          %v530 = vsub.s32 0, %v529
          %v531 = vrot.slane %v526, %v530
          %v533 = vmul.f32 %v525, %v531
          %vm534 = vcmask 1041408
          %v535 = vsel %vm534, %v533, 0.0
          %536 = vadd.xlane.f32.xlu0 %v535
          %v537 = vpop.xlane.xlu0 %536
          %vm538 = vcmask 1024
          %539 = vst.msk [vmem:[%s271] sm:$0x3] %vm538, %v537
        $region52: #{tpu_custom_call.1} parent=35 // pred_fallthru
          _
        %p540 = scmp.lt.s32.totalorder %s25, 0
        %s541 = scalar_select %p540, %s25, 0
        %s542 = smul.addr %s541, 2
        %s543 = scalar_lea.vmem %s4, %s542
        // Predicated region
        $region53: #{tpu_custom_call.1} parent=35 // pred_check
          %p544 = pneg %p147
        $region54: #{tpu_custom_call.1} parent=35 // pred_check_branch
          %546 = sbr.rel (%p544) target = $region56
        $region55: #{tpu_custom_call.1} parent=35 // pred_region
          _
        $region56: #{tpu_custom_call.1} parent=35 // pred_fallthru
          _
        // Predicated region
        $region57: #{tpu_custom_call.1} parent=35 // pred_check
          %p547 = pneg %p147
        $region58: #{tpu_custom_call.1} parent=35 // pred_check_branch
          %549 = sbr.rel (%p547) target = $region60
        $region59: #{tpu_custom_call.1} parent=35 // pred_region
          %p550 = scmp.lt.s32.totalorder %s25, 0
          %s551 = scalar_select %p550, %s25, 0
          %s552 = smul.addr %s551, 2
          %s553 = scalar_lea.vmem %s4, %s552
        $region60: #{tpu_custom_call.1} parent=35 // pred_fallthru
          _
      $region36: #{tpu_custom_call.1} parent=5 // pred_fallthru
        _
      %p554 = scmp.le.s32.totalorder 2, %s16
      // Predicated region
      $region61: #{tpu_custom_call.1} parent=5 // pred_check
        %p555 = pneg %p554
      $region62: #{tpu_custom_call.1} parent=5 // pred_check_branch
        %557 = sbr.rel (%p555) target = $region64
      $region63: #{tpu_custom_call.1} parent=5 // pred_region
        %s558 = ssub.s32 %s16, 2
      $region64: #{tpu_custom_call.1} parent=5 // pred_fallthru
        _
    $region6: #{tpu_custom_call.1} parent=1 // loop_footer
      %s20 = sadd.s32 1, %s16
    $region7: #{tpu_custom_call.1} parent=1 // loop_footer_branch
      %15 = sbr.rel target = $region3
    $region8: #{tpu_custom_call.1} parent=1 // loop_exit
      _
    %559 = vsyncpa [#allocation4], 1
    %s560 = scalar_lea.sflag [#allocation4], 1
    %561 = vsyncpa %s560, 1
    %562 = vsyncpa [#allocation6], 1
    %s563 = scalar_lea.sflag [#allocation6], 1
    %564 = vsyncpa %s563, 1

</llo_original>
